<compile_context>
chip_gen: v6e
topology: v6e:2x2x1
jax: 0.10.0
libtpu: 0.0.40
codegen_flags: <defaults>
</compile_context>

<pallas_src>
import jax
import jax.numpy as jnp
from jax.experimental import pallas as pl
from jax.experimental.pallas import tpu as pltpu


def _normalization_kernel(stats_ref, img_ref, out_ref):
    # stats_ref: (rows, 2) VMEM tile; lane 0 = mean, lane 1 = 1/std.
    # img_ref / out_ref: (rows, lane_block) lane-dense tiles.
    x = img_ref[...]
    mean = stats_ref[:, 0:1]       # (rows, 1) -> broadcast along lanes
    inv_std = stats_ref[:, 1:2]    # (rows, 1)
    out_ref[...] = ((x - mean) * inv_std).astype(out_ref.dtype)


def _vmem_capacity_bytes():
    """Physical VMEM per TensorCore; conservative fallback if query fails."""
    try:
        info = pltpu.get_tpu_info()
        cap = getattr(info, "vmem_capacity_bytes", None)
        if cap:
            return int(cap)
    except Exception:
        pass
    return 64 * 1024 * 1024  # v7x is the smallest generation (64 MiB / TC)


def _choose_tiles(R, L, itemsize, target_block_bytes, min_steps):
    """Pick (rows, lane_block) obeying the (8, 128) tiling rule."""
    # Lane (last-dim) block: multiple of 128, or the full extent.
    if L % 128 == 0 and L > 128:
        lane_cap = max(128, (target_block_bytes // max(1, 8 * itemsize)) // 128 * 128)
        lane_block = min(L, lane_cap)
    else:
        lane_block = L  # full extent (required when L is not 128-aligned)

    # Row (sublane) block: multiple of 8, or the full extent.
    row_bytes = max(1, lane_block * itemsize)
    rows = max(1, target_block_bytes // row_bytes)
    if rows >= R:
        rows = R
    else:
        rows = max(8, (rows // 8) * 8)
        if rows >= R:
            rows = R

    def steps(r, lb):
        return pl.cdiv(R, r) * pl.cdiv(L, lb)

    # Ensure enough grid steps for DMA pipelining / megacore when feasible.
    while steps(rows, lane_block) < min_steps and rows > 8 and rows % 8 == 0:
        rows = max(8, ((rows // 2) // 8) * 8)
    while (steps(rows, lane_block) < min_steps and L % 128 == 0
           and lane_block > 128 and lane_block % 128 == 0):
        lane_block = max(128, ((lane_block // 2) // 128) * 128)

    return rows, lane_block


def normalization(img, mean, std, *, target_block_bytes=None):
    """(img - mean[:, None, None]) / std[:, None, None] for NCHW img."""
    B, C, H, W = img.shape
    assert mean.shape == (C,) and std.shape == (C,)

    R = B * C          # one row per (batch, channel) plane
    L = H * W          # flattened spatial axis -> lane-dense last dim

    # Pathological corner: lane dim far below one vreg width -> masked stores
    # would dominate; plain XLA is already at roofline here.
    if L < 128:
        m = mean.reshape(1, C, 1, 1).astype(img.dtype)
        s = std.reshape(1, C, 1, 1).astype(img.dtype)
        return ((img - m) / s).astype(img.dtype)

    itemsize = jnp.dtype(img.dtype).itemsize
    vmem_cap = _vmem_capacity_bytes()

    if target_block_bytes is None:
        # Bigger tiles on 128 MiB chips (v5e/v6e), capped for v7x's 64 MiB.
        target_block_bytes = (16 * 1024 * 1024 if vmem_cap >= 96 * 1024 * 1024
                              else 8 * 1024 * 1024)

    total_bytes = R * L * itemsize
    min_steps = 4 if total_bytes >= 4 * 1024 * 1024 else 1
    rows, lane_block = _choose_tiles(R, L, itemsize, target_block_bytes, min_steps)

    # Stats dtype: keep bf16 stats for bf16 images (bf16 VPU on v6e/v7x),
    # f32 otherwise.
    if img.dtype == jnp.dtype(jnp.bfloat16):
        stat_dtype = jnp.bfloat16
    else:
        stat_dtype = jnp.float32

    x = img.reshape(R, L)
    mean_col = jnp.tile(mean.astype(stat_dtype), B).reshape(R, 1)
    inv_std_col = jnp.tile(
        (1.0 / std.astype(jnp.float32)).astype(stat_dtype), B).reshape(R, 1)
    stats = jnp.concatenate([mean_col, inv_std_col], axis=1)  # (R, 2)

    # Derive the VMEM limit from the actual double-buffered footprint:
    #   2 bufs x image-in + 2 bufs x image-out + 2 bufs x (rows, 2->128) stats
    tile_bytes = rows * lane_block * itemsize
    stat_tile_bytes = rows * 128 * jnp.dtype(stat_dtype).itemsize
    footprint = 2 * 2 * tile_bytes + 2 * stat_tile_bytes
    vmem_limit = int(footprint * 1.25) + (1 << 20)
    vmem_limit = max(vmem_limit, 16 * 1024 * 1024)
    vmem_limit = min(vmem_limit, (vmem_cap * 3) // 4)

    grid = (pl.cdiv(R, rows), pl.cdiv(L, lane_block))

    out = pl.pallas_call(
        _normalization_kernel,
        out_shape=jax.ShapeDtypeStruct((R, L), img.dtype),
        grid_spec=pltpu.PrefetchScalarGridSpec(
            num_scalar_prefetch=0,
            grid=grid,
            in_specs=[
                pl.BlockSpec((rows, 2), lambda i, j: (i, 0)),          # fused stats
                pl.BlockSpec((rows, lane_block), lambda i, j: (i, j)),  # image
            ],
            out_specs=pl.BlockSpec((rows, lane_block), lambda i, j: (i, j)),
        ),
        compiler_params=pltpu.CompilerParams(
            dimension_semantics=("parallel", "parallel"),
            vmem_limit_bytes=vmem_limit,
        ),
    )(stats, x)

    return out.reshape(B, C, H, W)


if __name__ == "__main__":
    key = jax.random.PRNGKey(0)
    B, C, H, W = 2, 3, 16, 16

    img = jax.random.uniform(key, (B, C, H, W), dtype=jnp.float32)

    # ImageNet-style per-channel statistics (same semantics as the torch
    # module's mean.view(-1,1,1) / std.view(-1,1,1)).
    mean = jnp.array([0.485, 0.456, 0.406], dtype=jnp.float32)
    std = jnp.array([0.229, 0.224, 0.225], dtype=jnp.float32)

    out = normalization(img, mean, std)
    out = jax.block_until_ready(out)

    # Pure-JAX reference check (multiply-by-reciprocal differs from a true
    # divide by at most ~1 ulp, so a slightly loose tolerance is used).
    ref = (img - mean[None, :, None, None]) / std[None, :, None, None]
    assert out.shape == ref.shape and out.dtype == ref.dtype
    assert jnp.allclose(out, ref, atol=1e-5, rtol=1e-5)

    print("KERNEL_OK")
</pallas_src>

<mosaic_0001>
module attributes {stable_mosaic.version = 11 : i64} {
  func.func @_normalization_kernel(%arg0: i32, %arg1: i32, %arg2: memref<6x2xf32, #tpu.memory_space<vmem>>, %arg3: memref<6x256xf32, #tpu.memory_space<vmem>>, %arg4: memref<6x256xf32, #tpu.memory_space<vmem>>) attributes {dimension_semantics = [#tpu.dimension_semantics<parallel>, #tpu.dimension_semantics<parallel>], iteration_bounds = array<i64: 1, 1>, scalar_prefetch = 0 : i64, scratch_operands = 0 : i64, tpu.core_type = #tpu.core_type<tc>, window_params = [{transform_indices = @transform_0, window_bounds = array<i64: 6, 2>}, {transform_indices = @transform_1, window_bounds = array<i64: 6, 256>}, {transform_indices = @transform_2, window_bounds = array<i64: 6, 256>}]} {
    %c0 = arith.constant 0 : index
    %c0_0 = arith.constant 0 : index
    %0 = vector.load %arg3[%c0, %c0_0] : memref<6x256xf32, #tpu.memory_space<vmem>>, vector<6x256xf32>
    %c0_1 = arith.constant 0 : index
    %c0_2 = arith.constant 0 : index
    %1 = vector.load %arg2[%c0_1, %c0_2] : memref<6x2xf32, #tpu.memory_space<vmem>>, vector<6x1xf32>
    %c0_3 = arith.constant 0 : index
    %c1 = arith.constant 1 : index
    %2 = vector.load %arg2[%c0_3, %c1] : memref<6x2xf32, #tpu.memory_space<vmem>>, vector<6x1xf32>
    %3 = vector.broadcast %1 : vector<6x1xf32> to vector<6x256xf32>
    %4 = arith.subf %0, %3 : vector<6x256xf32>
    %5 = vector.broadcast %2 : vector<6x1xf32> to vector<6x256xf32>
    %6 = arith.mulf %4, %5 : vector<6x256xf32>
    %c0_4 = arith.constant 0 : index
    %c0_5 = arith.constant 0 : index
    %7 = vector.load %arg4[%c0_4, %c0_5] : memref<6x256xf32, #tpu.memory_space<vmem>>, vector<6x256xf32>
    tpu.vector_store %arg4[%c0_4, %c0_5], %6 {strides = array<i32>} : memref<6x256xf32, #tpu.memory_space<vmem>>, vector<6x256xf32>,
    return
  }
  func.func @transform_0(%arg0: i32, %arg1: i32) -> (i32, i32) {
    %c0_i32 = arith.constant 0 : i32
    %c0_i32_0 = arith.constant 0 : i32
    return %arg0, %c0_i32 : i32, i32
  }
  func.func @transform_1(%arg0: i32, %arg1: i32) -> (i32, i32) {
    %c0_i32 = arith.constant 0 : i32
    return %arg0, %arg1 : i32, i32
  }
  func.func @transform_2(%arg0: i32, %arg1: i32) -> (i32, i32) {
    %c0_i32 = arith.constant 0 : i32
    return %arg0, %arg1 : i32, i32
  }
}

</mosaic_0001>

<llo_original>
// kernel: tpu_custom_call.1
$region0: #{tpu_custom_call.1}
  #allocation0 [shape = 'u32[]', space=smem, size = 0x4, offset = 0x4, fixed_abs, tag = 'smem constant byte address 0x4 - core index']
  #allocation1 [shape = 'u32[144,128]{1,0:T(1,128)}', space=vmem, size = 0x12000, scoped, tag = 'internal scratch']
  %s0 = inlined_call_operand.vmem [shape: f32[6,2], index: 0, kind: input, shape index: {}]
  %s1 = inlined_call_operand.hbm [shape: f32[6,256], index: 1, kind: input, shape index: {}]
  %s2 = inlined_call_operand.hbm [shape: f32[6,256], index: 2, kind: output, shape index: {}]
  %s3 = sld [smem:[#allocation0]]
  $region22: #{tpu_custom_call.1} parent=0
    _
  %s5 = ssub.s32 1, %s3
  %s6 = scalar_select 0, %s5, %s3
  $region1: #{tpu_custom_call.1} parent=0
    #allocation2 [shape = 'u8[8192]{0}', space=vmem, size = 0x2000, scoped, tag = 'input window, operand 1, single buffered']
    #allocation3 [shape = 's32[1]{0}', space=sflag, size = 0x4, scoped, tag = 'scoped memory for tpu_custom_call.1']
    #allocation4 [shape = 's32[1]{0}', space=sflag, size = 0x4, scoped, tag = 'scoped memory for tpu_custom_call.1']
    #allocation5 [shape = 'u8[8192]{0}', space=vmem, size = 0x2000, scoped, tag = 'output window, operand 0, single buffered']
    %7 = vsyncpa [#allocation3], 0
    %8 = vsyncpa [#allocation4], 0
    // Predicated region
    $region2: #{tpu_custom_call.1} parent=1 // pred_check
      _
    $region3: #{tpu_custom_call.1} parent=1 // pred_check_branch
      %10 = sbr.rel (0) target = $region5
    $region4: #{tpu_custom_call.1} parent=1 // pred_region
      _
    $region5: #{tpu_custom_call.1} parent=1 // pred_fallthru
      _
    // Predicated region
    $region6: #{tpu_custom_call.1} parent=1 // pred_check
      _
    $region7: #{tpu_custom_call.1} parent=1 // pred_check_branch
      %12 = sbr.rel (0) target = $region9
    $region8: #{tpu_custom_call.1} parent=1 // pred_region
      %s14 = ssub.s32 256, 256
      %15 = vsyncadd [#allocation3], %s14
      %s17 = sshll.u32 [#allocation2], 4
      %s18 = int_to_ptr.vmem [resolvable:$true] %s17
      %20 = dma.hbm_to_vmem [thread:$0]  %s1, 256, %s18, [#allocation3]
    $region9: #{tpu_custom_call.1} parent=1 // pred_fallthru
      _
    // Predicated region
    $region10: #{tpu_custom_call.1} parent=1 // pred_check
      _
    $region11: #{tpu_custom_call.1} parent=1 // pred_check_branch
      %22 = sbr.rel (0) target = $region13
    $region12: #{tpu_custom_call.1} parent=1 // pred_region
      %23 = dma.done [#allocation3], 256
    $region13: #{tpu_custom_call.1} parent=1 // pred_fallthru
      _
    %v24 = vld [vmem:[#allocation2] sm:$0x3f]
    %v25 = vld [vmem:[#allocation2 + $0x8] sm:$0x3f]
    %v26 = vld [vmem:[%s0] sm:$0x3f]
    %28 = vset.pattern.permute.xlu0 0
    %29 = vperm.xlu0 %28, %v26
    %v30 = vpop.permute.xlu0 %29
    %v32 = vsub.f32 %v24, %v30
    %v33 = vsub.f32 %v25, %v30
    %34 = vset.pattern.permute.xlu0 1
    %35 = vperm.xlu0 %34, %v26
    %v36 = vpop.permute.xlu0 %35
    %v38 = vmul.f32 %v32, %v36
    %v39 = vmul.f32 %v33, %v36
    %40 = vst [vmem:[#allocation5] sm:$0x3f] %v38
    %41 = vst [vmem:[#allocation5 + $0x8] sm:$0x3f] %v39
    // Predicated region
    $region14: #{tpu_custom_call.1} parent=1 // pred_check
      _
    $region15: #{tpu_custom_call.1} parent=1 // pred_check_branch
      %43 = sbr.rel (0) target = $region17
    $region16: #{tpu_custom_call.1} parent=1 // pred_region
      %s45 = ssub.s32 256, 256
      %46 = vsyncadd [#allocation4], %s45
      %s48 = sshll.u32 [#allocation5], 4
      %s49 = int_to_ptr.vmem [resolvable:$true] %s48
      %51 = dma.vmem_to_hbm [thread:$0]  %s49, 256, %s2, [#allocation4]
    $region17: #{tpu_custom_call.1} parent=1 // pred_fallthru
      _
    // Predicated region
    $region18: #{tpu_custom_call.1} parent=1 // pred_check
      _
    $region19: #{tpu_custom_call.1} parent=1 // pred_check_branch
      %53 = sbr.rel (0) target = $region21
    $region20: #{tpu_custom_call.1} parent=1 // pred_region
      %54 = dma.done [#allocation4], 256
    $region21: #{tpu_custom_call.1} parent=1 // pred_fallthru
      _
    %55 = vsyncpa [#allocation3], 1
    %56 = vsyncpa [#allocation4], 1

</llo_original>
